<compile_context>
chip_gen: v7x
topology: tpu7x:2x2x1
jax: 0.10.0
libtpu: 0.0.40
codegen_flags: <defaults>
</compile_context>

<pallas_src>
import math

import jax
import jax.numpy as jnp
from jax.experimental import pallas as pl
from jax.experimental.pallas import tpu as pltpu


# ----------------------------- zero-copy path --------------------------------

def _alias_identity_kernel(x_hbm_ref, o_hbm_ref, flag_ref):
    # The output HBM buffer aliases the input buffer, so the data is already
    # exactly where it needs to be: move nothing.  A single SMEM scalar store
    # keeps the kernel body non-trivial; the HBM refs are intentionally unused.
    del x_hbm_ref, o_hbm_ref
    flag_ref[0] = jnp.int32(1)


def _zero_copy_identity(x):
    return pl.pallas_call(
        _alias_identity_kernel,
        out_shape=jax.ShapeDtypeStruct(x.shape, x.dtype),
        in_specs=[pl.BlockSpec(memory_space=pl.ANY)],   # stay in HBM, no auto-DMA
        out_specs=pl.BlockSpec(memory_space=pl.ANY),
        scratch_shapes=[pltpu.SMEM((1,), jnp.int32)],
        input_output_aliases={0: 0},                    # output buffer == input buffer
    )(x)


# ----------------------- optional materializing copy -------------------------

_LANES_CANDIDATES = (1024, 512, 256, 128)
_SUBLANES = 8


def _pick_slab(total_elems):
    """Pick a lane/sublane-dense 2D layout (rows, lanes) for total_elems."""
    # Prefer: lanes a large multiple of 128 AND rows a multiple of 8
    for lanes in _LANES_CANDIDATES:
        if total_elems % lanes == 0 and (total_elems // lanes) % _SUBLANES == 0:
            return total_elems // lanes, lanes
    # Next best: lanes a multiple of 128
    for lanes in _LANES_CANDIDATES:
        if total_elems % lanes == 0:
            return total_elems // lanes, lanes
    # Odd sizes: single full-extent block ((8,128) rule waived for full blocks)
    return 1, total_elems


def _copy_kernel(x_ref, o_ref):
    o_ref[...] = x_ref[...]


def _materializing_copy(x):
    total = int(x.size)
    rows, lanes = _pick_slab(total)
    flat = x.reshape(rows, lanes)
    itemsize = flat.dtype.itemsize

    # Keep each block <= ~2 MiB so double-buffered input+output stays well
    # inside the scoped VMEM budget on all generations (incl. v7x's 64 MiB).
    max_rows = max(_SUBLANES, (2 * 1024 * 1024) // max(1, lanes * itemsize))
    block_rows = min(rows, max_rows)
    if block_rows < rows:  # full (8,128) tiles per block when actually tiling
        block_rows = max(_SUBLANES, (block_rows // _SUBLANES) * _SUBLANES)
    grid = (pl.cdiv(rows, block_rows),)

    copied = pl.pallas_call(
        _copy_kernel,
        out_shape=jax.ShapeDtypeStruct((rows, lanes), flat.dtype),
        grid=grid,
        in_specs=[pl.BlockSpec((block_rows, lanes), lambda i: (i, 0))],
        out_specs=pl.BlockSpec((block_rows, lanes), lambda i: (i, 0)),
        compiler_params=pltpu.CompilerParams(
            dimension_semantics=("parallel",),       # megacore / v7x 2-TC sharding
            vmem_limit_bytes=64 * 1024 * 1024,
        ),
        cost_estimate=pl.CostEstimate(
            flops=0, transcendentals=0,
            bytes_accessed=2 * total * itemsize),
    )(flat)
    return copied.reshape(x.shape)


# --------------------------------- wrapper ------------------------------------

def reshape_forward(tensor, tensor_size, *, materialize_copy=False):
    """Pallas equivalent of ReShape.forward.

    Default is zero-copy: the pallas_call aliases its output buffer onto the
    input buffer and moves no data; the shape change is metadata only (same as
    torch .view).  Set materialize_copy=True to force an explicit tiled copy.
    """
    batch = tensor.shape[0]
    out_tail = tuple(int(d) for d in tensor_size[1:])
    n_in = math.prod(tensor.shape[1:]) if tensor.ndim > 1 else 1
    n_out = math.prod(out_tail) if out_tail else 1
    assert n_in == n_out, (
        f"cannot view {tensor.shape} as ({batch}, {out_tail}): {n_in} != {n_out}")

    if materialize_copy:
        moved = _materializing_copy(tensor)
    else:
        moved = _zero_copy_identity(tensor)

    # Final .view(): pure metadata reshape (glue, no compute).
    return moved.reshape((batch,) + out_tail)


if __name__ == "__main__":
    key = jax.random.PRNGKey(0)

    # Typical ConvolutionalVAE decoder usage: a flat latent projection is
    # reshaped back into a conv feature map.  B=2, C=4, H=W=16.
    B, C, H, W = 2, 4, 16, 16
    tensor_size = (B, C, H, W)          # module ignores tensor_size[0]

    x = jax.random.normal(key, (B, C * H * W), dtype=jnp.float32)
    y_ref = x.reshape(B, C, H, W)       # what torch .view returns

    # Default zero-copy path.
    y = jax.block_until_ready(reshape_forward(x, tensor_size))
    assert y.shape == (B, C, H, W), y.shape
    assert y.dtype == x.dtype
    assert bool(jnp.array_equal(y, y_ref))

    # Optional explicit-copy path (tiled, lane/sublane-dense, parallel grid).
    y2 = jax.block_until_ready(
        reshape_forward(x, tensor_size, materialize_copy=True))
    assert y2.shape == (B, C, H, W), y2.shape
    assert y2.dtype == x.dtype
    assert bool(jnp.array_equal(y2, y_ref))

    print("KERNEL_OK")
</pallas_src>

<mosaic_0001>
module attributes {stable_mosaic.version = 11 : i64} {
  func.func @_alias_identity_kernel(%arg0: memref<2x1024xf32, #tpu.memory_space<any>>, %arg1: memref<2x1024xf32, #tpu.memory_space<any>>, %arg2: memref<1xi32, #tpu.memory_space<smem>>) attributes {dimension_semantics = [], scalar_prefetch = 0 : i64, scratch_operands = 1 : i64, tpu.core_type = #tpu.core_type<tc>} {
    %c1_i32 = arith.constant 1 : i32
    %c0 = arith.constant 0 : index
    %0 = memref.load %arg2[%c0] : memref<1xi32, #tpu.memory_space<smem>>
    memref.store %c1_i32, %arg2[%c0] : memref<1xi32, #tpu.memory_space<smem>>
    return
  }
}

</mosaic_0001>

<llo_original>
// kernel: tpu_custom_call.1
$region0: #{tpu_custom_call.1}
  #allocation0 [shape = 'u32[]', space=smem, size = 0x4, offset = 0x4, fixed_abs, tag = 'smem constant byte address 0x4 - core index']
  #allocation1 [shape = 'u32[144,128]{1,0:T(1,128)}', space=vmem, size = 0x12000, scoped, tag = 'internal scratch']
  #allocation2 [shape = 's32[1]{0:T(128)}', space=smem, size = 0x200, scoped, tag = 'scratch operand']
  %s0 = inlined_call_operand.hbm [shape: f32[2,1024], index: 0, kind: input, shape index: {}, may-alias: {0,1}]
  %s1 = inlined_call_operand.hbm [shape: f32[2,1024], index: 1, kind: output, shape index: {}, may-alias: {0,1}]
  %s2 = sld [smem:[#allocation0]]
  $region2: #{tpu_custom_call.1} parent=0
    _
  %s4 = ssub.s32 1, %s2
  %s5 = scalar_select 0, %s4, %s2
  %s6 = scalar_lea.smem [#allocation2], 0
  %7 = sst [smem:[%s6]] 1

</llo_original>
